<compile_context>
chip_gen: v7x
topology: tpu7x:2x2x1
jax: 0.10.0
libtpu: 0.0.40
codegen_flags: <defaults>
</compile_context>

<pallas_src>
import functools

import jax
import jax.numpy as jnp
from jax import lax
from jax.experimental import pallas as pl
from jax.experimental.pallas import tpu as pltpu

# Finite pad sentinel: sentinel^2 ~ 1e36 << f32 max, and pad-vs-pad distances
# are exactly 0, so no inf/NaN can be produced anywhere.
_SENTINEL = 1e18


def _round_up(x: int, k: int) -> int:
    return (x + k - 1) // k * k


def _cdiv(a: int, b: int) -> int:
    return (a + b - 1) // b


def _chamfer_kernel(pred_ref, true_t_ref, colmin_ref, rowsum_ref,
                    row_min_ref, acc_ref,
                    *, n, tn, tm, chunk, ni_half, nj):
    # pred_ref   : (TN, 2)       f32  block of sentinel-padded predictions
    # true_t_ref : (2, TM)       f32  block of sentinel-padded truth (transposed)
    # colmin_ref : (1, 1, M_pad) f32  per-core running column minima (squared)
    # rowsum_ref : (1, 1, 128)   f32  per-core row-min-distance sum (at [0,0,0])
    # row_min_ref: (TN, 1)       f32  running row minima (squared), scratch
    # acc_ref    : (1,)          f32  SMEM scalar accumulator (per core)
    c = pl.program_id(0)          # core split of the pred rows (parallel)
    i = pl.program_id(1)          # pred-row block inside this core's half
    j = pl.program_id(2)          # true-col block (innermost)

    @pl.when((i == 0) & (j == 0))
    def _init_acc():
        acc_ref[0] = jnp.float32(0.0)

    @pl.when(j == 0)
    def _init_row_min():
        row_min_ref[...] = jnp.full(row_min_ref.shape, jnp.inf, jnp.float32)

    col_base = pl.multiple_of(j * tm, tm)

    @pl.when(i == 0)
    def _init_col_min():
        colmin_ref[0, :, pl.ds(col_base, tm)] = jnp.full(
            (1, tm), jnp.inf, jnp.float32)

    px = pred_ref[:, 0:1]          # (TN, 1)
    py = pred_ref[:, 1:2]          # (TN, 1)

    nchunk = tm // chunk           # static

    def body(q, carry):
        loc = pl.multiple_of(q * chunk, chunk)              # offset in tile
        glob = pl.multiple_of(j * tm + q * chunk, chunk)    # offset in colmin
        tx = true_t_ref[0:1, pl.ds(loc, chunk)]             # (1, chunk)
        ty = true_t_ref[1:2, pl.ds(loc, chunk)]             # (1, chunk)
        dx = px - tx                                         # (TN, chunk)
        dy = py - ty
        d2 = dx * dx + dy * dy        # squared distances; sqrt deferred
        # Running row minima (squared).
        row_min_ref[...] = jnp.minimum(
            row_min_ref[...], jnp.min(d2, axis=1, keepdims=True))
        # Running per-core column minima, accumulated directly in the
        # resident output block (indexed only by the core axis).
        cur = colmin_ref[0, :, pl.ds(glob, chunk)]
        colmin_ref[0, :, pl.ds(glob, chunk)] = jnp.minimum(
            cur, jnp.min(d2, axis=0, keepdims=True))
        return carry

    lax.fori_loop(0, nchunk, body, 0)

    # Row block finished: sqrt only the (TN, 1) minima, mask padded rows.
    @pl.when(j == nj - 1)
    def _finalize_rows():
        gid = (c * ni_half + i) * tn + lax.broadcasted_iota(
            jnp.int32, (tn, 1), 0)
        rm = jnp.where(gid < n, jnp.sqrt(row_min_ref[...]), 0.0)
        acc_ref[0] = acc_ref[0] + jnp.sum(rm)

    # Core finished: publish this core's partial row-sum.
    @pl.when((i == ni_half - 1) & (j == nj - 1))
    def _publish_rowsum():
        rowsum_ref[...] = jnp.full(rowsum_ref.shape, acc_ref[0], jnp.float32)


def chamfer_loss(y_pred, y_true, *, tn=1024, tm=4096, chunk=512,
                 vmem_limit_bytes=48 * 1024 * 1024):
    """Pallas implementation of CustomLoss.forward.

    tn / tm are the pred / true grid-tile sizes; `chunk` bounds the in-kernel
    working set to (tn, chunk) f32 temporaries, so the defaults fit every
    generation (v7x: 64 MiB physical VMEM; limit kept at 48 MiB).  On v5e/v6e
    (128 MiB physical) tm can be raised further to shave per-step overhead.
    """
    yp = jnp.asarray(y_pred, jnp.float32).reshape(-1, 2)   # (N, 2)
    yt = jnp.asarray(y_true, jnp.float32).reshape(-1, 2)   # (M, 2)
    n = yp.shape[0]
    m = yt.shape[0]

    # --- row (pred) tiling: two-way core split along pred rows -------------
    tn = min(tn, max(8, _round_up(_cdiv(n, 2), 8)))        # sublane granularity
    ni_half = _cdiv(_cdiv(n, tn), 2)                        # row blocks / core
    n_pad = 2 * ni_half * tn

    # --- col (true) tiling; tm must be a multiple of chunk ------------------
    tm = min(tm, _round_up(m, 128))                         # lane granularity
    if tm <= chunk:
        chunk = tm
    else:
        chunk = _round_up(chunk, 128)
        tm = _round_up(tm, chunk)
    m_pad = _round_up(m, tm)
    nj = m_pad // tm

    # Sentinel padding (large but finite) instead of per-tile masking: padded
    # points never win a min against real points and pad-vs-pad pairs give 0,
    # so no inf-inf -> NaN.  Padded entries are excluded from the sums only in
    # the cheap finalize paths (rows in-kernel, columns in the epilogue).
    yp_p = jnp.pad(yp, ((0, n_pad - n), (0, 0)), constant_values=_SENTINEL)
    # y_true passed transposed (2, M_pad) so true coords are lane-dense and
    # broadcast as (1, chunk) rows against the (TN, 1) pred columns.
    yt_t = jnp.pad(yt, ((0, m_pad - m), (0, 0)),
                   constant_values=_SENTINEL).T             # (2, M_pad)

    grid = (2, ni_half, nj)                                  # core, i, j

    kernel = functools.partial(_chamfer_kernel, n=n, tn=tn, tm=tm,
                               chunk=chunk, ni_half=ni_half, nj=nj)

    colmin, rowsum = pl.pallas_call(
        kernel,
        out_shape=(jax.ShapeDtypeStruct((2, 1, m_pad), jnp.float32),
                   jax.ShapeDtypeStruct((2, 1, 128), jnp.float32)),
        grid_spec=pltpu.PrefetchScalarGridSpec(
            num_scalar_prefetch=0,
            grid=grid,
            in_specs=[
                # Pred kept as (TN, 2) blocks: the lane-padded block is tiny
                # next to the per-chunk temporaries and avoids an in-kernel
                # (1,TN)->(TN,1) relayout.
                pl.BlockSpec((tn, 2), lambda c, i, j: (c * ni_half + i, 0)),
                pl.BlockSpec((2, tm), lambda c, i, j: (0, j)),
            ],
            out_specs=[
                # Per-core partial column minima: block index depends only on
                # the core axis -> resident accumulator for that core.
                pl.BlockSpec((1, 1, m_pad), lambda c, i, j: (c, 0, 0)),
                # Per-core partial row-distance sum (scalar at [c, 0, 0]).
                pl.BlockSpec((1, 1, 128), lambda c, i, j: (c, 0, 0)),
            ],
            scratch_shapes=[
                pltpu.VMEM((tn, 1), jnp.float32),   # running row minima
                pltpu.SMEM((1,), jnp.float32),      # scalar row-sum accumulator
            ],
        ),
        compiler_params=pltpu.CompilerParams(
            dimension_semantics=("parallel", "arbitrary", "arbitrary"),
            vmem_limit_bytes=vmem_limit_bytes,
        ),
    )(yp_p, yt_t)

    # Tiny plain-JAX epilogue: combine the two per-core partials.
    col_min = jnp.minimum(colmin[0, 0, :], colmin[1, 0, :])      # (M_pad,)
    col_valid = jnp.arange(m_pad) < m
    col_total = jnp.sum(jnp.where(col_valid, jnp.sqrt(col_min), 0.0))
    row_total = rowsum[0, 0, 0] + rowsum[1, 0, 0]
    return (row_total + col_total) / jnp.float32(m)


def chamfer_loss_ref(y_pred, y_true):
    """Pure-JAX reference mirroring the PyTorch module."""
    yp = jnp.asarray(y_pred, jnp.float32).reshape(-1, 2)
    yt = jnp.asarray(y_true, jnp.float32).reshape(-1, 2)
    diff = yp[:, None, :] - yt[None, :, :]
    dist = jnp.sqrt(jnp.sum(diff * diff, axis=-1))
    total = jnp.sum(jnp.min(dist, axis=1)) + jnp.sum(jnp.min(dist, axis=0))
    return total / yt.shape[0]


if __name__ == "__main__":
    key = jax.random.PRNGKey(0)
    k1, k2, k3, k4, k5, k6 = jax.random.split(key, 6)

    # Case 1: small shapes straight out of the module's forward (anything
    # reshapeable to (-1, 2)); point counts NOT multiples of 8 / 128 to
    # exercise the sentinel padding + finalize masks.
    y_pred = jax.random.normal(k1, (2, 9, 2), dtype=jnp.float32)    # 18 points
    y_true = jax.random.normal(k2, (2, 11, 2), dtype=jnp.float32)   # 22 points
    loss = jax.block_until_ready(chamfer_loss(y_pred, y_true))
    ref = jax.block_until_ready(chamfer_loss_ref(y_pred, y_true))
    assert jnp.allclose(loss, ref, rtol=1e-4, atol=1e-6), (loss, ref)

    # Case 2: small tiles -> multi-block grid on every axis: both core halves,
    # 2 row blocks / core, 2 column blocks, 4 lane chunks per tile.
    y_pred2 = jax.random.normal(k3, (150, 2), dtype=jnp.float32)    # 150 points
    y_true2 = jax.random.normal(k4, (1000, 2), dtype=jnp.float32)   # 1000 points
    loss2 = jax.block_until_ready(
        chamfer_loss(y_pred2, y_true2, tn=64, tm=512, chunk=128))
    ref2 = jax.block_until_ready(chamfer_loss_ref(y_pred2, y_true2))
    assert jnp.allclose(loss2, ref2, rtol=1e-4, atol=1e-6), (loss2, ref2)

    # Case 3: default tile sizes with a modestly larger cloud (multi-chunk
    # inner loop + 2 row blocks per core at the default tn/tm).
    y_pred3 = jax.random.normal(k5, (3000, 2), dtype=jnp.float32)
    y_true3 = jax.random.normal(k6, (2500, 2), dtype=jnp.float32)
    loss3 = jax.block_until_ready(chamfer_loss(y_pred3, y_true3))
    ref3 = jax.block_until_ready(chamfer_loss_ref(y_pred3, y_true3))
    assert jnp.allclose(loss3, ref3, rtol=1e-4, atol=1e-6), (loss3, ref3)

    print("KERNEL_OK")
</pallas_src>

<mosaic_0001>
module attributes {stable_mosaic.version = 11 : i64} {
  func.func @_chamfer_kernel(%arg0: i32, %arg1: i32, %arg2: i32, %arg3: memref<16x2xf32, #tpu.memory_space<vmem>>, %arg4: memref<2x128xf32, #tpu.memory_space<vmem>>, %arg5: memref<1x1x128xf32, #tpu.memory_space<vmem>>, %arg6: memref<1x1x128xf32, #tpu.memory_space<vmem>>, %arg7: memref<16x1xf32, #tpu.memory_space<vmem>>, %arg8: memref<1xf32, #tpu.memory_space<smem>>) attributes {dimension_semantics = [#tpu.dimension_semantics<parallel>, #tpu.dimension_semantics<arbitrary>, #tpu.dimension_semantics<arbitrary>], iteration_bounds = array<i64: 2, 1, 1>, scalar_prefetch = 0 : i64, scratch_operands = 2 : i64, tpu.core_type = #tpu.core_type<tc>, window_params = [{transform_indices = @transform_0, window_bounds = array<i64: 16, 2>}, {transform_indices = @transform_1, window_bounds = array<i64: 2, 128>}, {transform_indices = @transform_2, window_bounds = array<i64: 1, 1, 128>}, {transform_indices = @transform_3, window_bounds = array<i64: 1, 1, 128>}]} {
    %c0_i32 = arith.constant 0 : i32
    %0 = arith.cmpi eq, %arg1, %c0_i32 : i32
    %c0_i32_0 = arith.constant 0 : i32
    %1 = arith.cmpi eq, %arg2, %c0_i32_0 : i32
    %2 = arith.andi %0, %1 : i1
    %3 = arith.extui %2 : i1 to i32
    %c0_i32_1 = arith.constant 0 : i32
    %4 = arith.cmpi ne, %3, %c0_i32_1 : i32
    scf.if %4 {
      %cst_28 = arith.constant 0.000000e+00 : f32
      %c0_29 = arith.constant 0 : index
      %57 = memref.load %arg8[%c0_29] : memref<1xf32, #tpu.memory_space<smem>>
      memref.store %cst_28, %arg8[%c0_29] : memref<1xf32, #tpu.memory_space<smem>>
    } else {
    }
    %c0_i32_2 = arith.constant 0 : i32
    %5 = arith.cmpi eq, %arg2, %c0_i32_2 : i32
    %6 = arith.extui %5 : i1 to i32
    %c0_i32_3 = arith.constant 0 : i32
    %7 = arith.cmpi ne, %6, %c0_i32_3 : i32
    scf.if %7 {
      %cst_28 = arith.constant 0x7F800000 : f32
      %57 = vector.broadcast %cst_28 : f32 to vector<16x1xf32>
      %c0_29 = arith.constant 0 : index
      %c0_30 = arith.constant 0 : index
      %58 = vector.load %arg7[%c0_29, %c0_30] : memref<16x1xf32, #tpu.memory_space<vmem>>, vector<16x1xf32>
      tpu.vector_store %arg7[%c0_29, %c0_30], %57 {strides = array<i32>} : memref<16x1xf32, #tpu.memory_space<vmem>>, vector<16x1xf32>,
    } else {
    }
    %c128_i32 = arith.constant 128 : i32
    %8 = arith.muli %arg2, %c128_i32 : i32
    %9 = tpu.assume_multiple %8, 128 : i32
    %c0_i32_4 = arith.constant 0 : i32
    %10 = arith.cmpi eq, %arg1, %c0_i32_4 : i32
    %11 = arith.extui %10 : i1 to i32
    %c0_i32_5 = arith.constant 0 : i32
    %12 = arith.cmpi ne, %11, %c0_i32_5 : i32
    scf.if %12 {
      %cst_28 = arith.constant 0x7F800000 : f32
      %57 = vector.broadcast %cst_28 : f32 to vector<1x128xf32>
      %c0_29 = arith.constant 0 : index
      %c0_30 = arith.constant 0 : index
      %58 = arith.index_cast %9 : i32 to index
      %59 = vector.load %arg5[%c0_29, %c0_30, %58] : memref<1x1x128xf32, #tpu.memory_space<vmem>>, vector<1x1x128xf32>
      %60 = vector.shape_cast %59 : vector<1x1x128xf32> to vector<1x128xf32>
      %61 = vector.shape_cast %57 : vector<1x128xf32> to vector<1x1x128xf32>
      tpu.vector_store %arg5[%c0_29, %c0_30, %58], %61 {strides = array<i32>} : memref<1x1x128xf32, #tpu.memory_space<vmem>>, vector<1x1x128xf32>,
    } else {
    }
    %c0 = arith.constant 0 : index
    %c0_6 = arith.constant 0 : index
    %13 = vector.load %arg3[%c0, %c0_6] : memref<16x2xf32, #tpu.memory_space<vmem>>, vector<16x1xf32>
    %c0_7 = arith.constant 0 : index
    %c1 = arith.constant 1 : index
    %14 = vector.load %arg3[%c0_7, %c1] : memref<16x2xf32, #tpu.memory_space<vmem>>, vector<16x1xf32>
    %c0_i32_8 = arith.constant 0 : i32
    %c128_i32_9 = arith.constant 128 : i32
    %15 = arith.muli %c0_i32_8, %c128_i32_9 : i32
    %16 = tpu.assume_multiple %15, 128 : i32
    %c128_i32_10 = arith.constant 128 : i32
    %17 = arith.muli %arg2, %c128_i32_10 : i32
    %c128_i32_11 = arith.constant 128 : i32
    %18 = arith.muli %c0_i32_8, %c128_i32_11 : i32
    %19 = arith.addi %17, %18 : i32
    %20 = tpu.assume_multiple %19, 128 : i32
    %c0_12 = arith.constant 0 : index
    %21 = arith.index_cast %16 : i32 to index
    %22 = vector.load %arg4[%c0_12, %21] : memref<2x128xf32, #tpu.memory_space<vmem>>, vector<1x128xf32>
    %c1_13 = arith.constant 1 : index
    %23 = arith.index_cast %16 : i32 to index
    %24 = vector.load %arg4[%c1_13, %23] : memref<2x128xf32, #tpu.memory_space<vmem>>, vector<1x128xf32>
    %25 = vector.broadcast %13 : vector<16x1xf32> to vector<16x128xf32>
    %26 = vector.broadcast %22 : vector<1x128xf32> to vector<16x128xf32>
    %27 = arith.subf %25, %26 : vector<16x128xf32>
    %28 = vector.broadcast %14 : vector<16x1xf32> to vector<16x128xf32>
    %29 = vector.broadcast %24 : vector<1x128xf32> to vector<16x128xf32>
    %30 = arith.subf %28, %29 : vector<16x128xf32>
    %31 = arith.mulf %27, %27 : vector<16x128xf32>
    %32 = arith.mulf %30, %30 : vector<16x128xf32>
    %33 = arith.addf %31, %32 : vector<16x128xf32>
    %c0_14 = arith.constant 0 : index
    %c0_15 = arith.constant 0 : index
    %34 = vector.load %arg7[%c0_14, %c0_15] : memref<16x1xf32, #tpu.memory_space<vmem>>, vector<16x1xf32>
    %cst = arith.constant dense<0x7F800000> : vector<16xf32>
    %35 = vector.multi_reduction <minimumf>, %33, %cst [1] : vector<16x128xf32> to vector<16xf32>
    %36 = vector.shape_cast %35 : vector<16xf32> to vector<16x1xf32>
    %37 = arith.minimumf %34, %36 : vector<16x1xf32>
    %c0_16 = arith.constant 0 : index
    %c0_17 = arith.constant 0 : index
    %38 = vector.load %arg7[%c0_16, %c0_17] : memref<16x1xf32, #tpu.memory_space<vmem>>, vector<16x1xf32>
    tpu.vector_store %arg7[%c0_16, %c0_17], %37 {strides = array<i32>} : memref<16x1xf32, #tpu.memory_space<vmem>>, vector<16x1xf32>,
    %c0_18 = arith.constant 0 : index
    %c0_19 = arith.constant 0 : index
    %39 = arith.index_cast %20 : i32 to index
    %40 = vector.load %arg5[%c0_18, %c0_19, %39] : memref<1x1x128xf32, #tpu.memory_space<vmem>>, vector<1x1x128xf32>
    %41 = vector.shape_cast %40 : vector<1x1x128xf32> to vector<1x128xf32>
    %cst_20 = arith.constant dense<0x7F800000> : vector<128xf32>
    %42 = vector.multi_reduction <minimumf>, %33, %cst_20 [0] : vector<16x128xf32> to vector<128xf32>
    %43 = vector.shape_cast %42 : vector<128xf32> to vector<1x128xf32>
    %44 = arith.minimumf %41, %43 : vector<1x128xf32>
    %c0_21 = arith.constant 0 : index
    %c0_22 = arith.constant 0 : index
    %45 = arith.index_cast %20 : i32 to index
    %46 = vector.load %arg5[%c0_21, %c0_22, %45] : memref<1x1x128xf32, #tpu.memory_space<vmem>>, vector<1x1x128xf32>
    %47 = vector.shape_cast %46 : vector<1x1x128xf32> to vector<1x128xf32>
    %48 = vector.shape_cast %44 : vector<1x128xf32> to vector<1x1x128xf32>
    tpu.vector_store %arg5[%c0_21, %c0_22, %45], %48 {strides = array<i32>} : memref<1x1x128xf32, #tpu.memory_space<vmem>>, vector<1x1x128xf32>,
    %c1_i32 = arith.constant 1 : i32
    %c0_i32_23 = arith.constant 0 : i32
    %49 = arith.cmpi eq, %arg2, %c0_i32_23 : i32
    %50 = arith.extui %49 : i1 to i32
    %c0_i32_24 = arith.constant 0 : i32
    %51 = arith.cmpi ne, %50, %c0_i32_24 : i32
    scf.if %51 {
      %c1_i32_28 = arith.constant 1 : i32
      %57 = arith.muli %arg0, %c1_i32_28 : i32
      %58 = arith.addi %57, %arg1 : i32
      %c16_i32 = arith.constant 16 : i32
      %59 = arith.muli %58, %c16_i32 : i32
      %60 = tpu.iota {dimensions = array<i32: 0>} : vector<16x1xi32>
      %61 = vector.broadcast %59 : i32 to vector<16x1xi32>
      %62 = arith.addi %61, %60 : vector<16x1xi32>
      %c18_i32 = arith.constant 18 : i32
      %63 = vector.broadcast %c18_i32 : i32 to vector<16x1xi32>
      %64 = arith.cmpi slt, %62, %63 : vector<16x1xi32>
      %c0_29 = arith.constant 0 : index
      %c0_30 = arith.constant 0 : index
      %65 = vector.load %arg7[%c0_29, %c0_30] : memref<16x1xf32, #tpu.memory_space<vmem>>, vector<16x1xf32>
      %66 = math.sqrt %65 : vector<16x1xf32>
      %cst_31 = arith.constant 0.000000e+00 : f32
      %67 = vector.broadcast %cst_31 : f32 to vector<16x1xf32>
      %68 = arith.select %64, %66, %67 : vector<16x1xi1>, vector<16x1xf32>
      %c0_32 = arith.constant 0 : index
      %69 = memref.load %arg8[%c0_32] : memref<1xf32, #tpu.memory_space<smem>>
      %70 = vector.shape_cast %68 : vector<16x1xf32> to vector<1x16x1xf32>
      %cst_33 = arith.constant dense<0.000000e+00> : vector<1xf32>
      %71 = vector.multi_reduction <add>, %70, %cst_33 [1, 2] : vector<1x16x1xf32> to vector<1xf32>
      %72 = vector.shape_cast %71 : vector<1xf32> to vector<1x1x1xf32>
      %73 = vector.extract %72[0, 0, 0] : f32 from vector<1x1x1xf32>
      %74 = arith.addf %69, %73 : f32
      %c0_34 = arith.constant 0 : index
      %75 = memref.load %arg8[%c0_34] : memref<1xf32, #tpu.memory_space<smem>>
      memref.store %74, %arg8[%c0_34] : memref<1xf32, #tpu.memory_space<smem>>
    } else {
    }
    %c0_i32_25 = arith.constant 0 : i32
    %52 = arith.cmpi eq, %arg1, %c0_i32_25 : i32
    %c0_i32_26 = arith.constant 0 : i32
    %53 = arith.cmpi eq, %arg2, %c0_i32_26 : i32
    %54 = arith.andi %52, %53 : i1
    %55 = arith.extui %54 : i1 to i32
    %c0_i32_27 = arith.constant 0 : i32
    %56 = arith.cmpi ne, %55, %c0_i32_27 : i32
    scf.if %56 {
      %c0_28 = arith.constant 0 : index
      %57 = memref.load %arg8[%c0_28] : memref<1xf32, #tpu.memory_space<smem>>
      %58 = vector.broadcast %57 : f32 to vector<1x1x128xf32>
      %c0_29 = arith.constant 0 : index
      %c0_30 = arith.constant 0 : index
      %c0_31 = arith.constant 0 : index
      %59 = vector.load %arg6[%c0_29, %c0_30, %c0_31] : memref<1x1x128xf32, #tpu.memory_space<vmem>>, vector<1x1x128xf32>
      tpu.vector_store %arg6[%c0_29, %c0_30, %c0_31], %58 {strides = array<i32>} : memref<1x1x128xf32, #tpu.memory_space<vmem>>, vector<1x1x128xf32>,
    } else {
    }
    return
  }
  func.func @transform_0(%arg0: i32, %arg1: i32, %arg2: i32) -> (i32, i32) {
    %c1_i32 = arith.constant 1 : i32
    %0 = arith.muli %arg0, %c1_i32 : i32
    %1 = arith.addi %0, %arg1 : i32
    %c0_i32 = arith.constant 0 : i32
    %c0_i32_0 = arith.constant 0 : i32
    return %1, %c0_i32 : i32, i32
  }
  func.func @transform_1(%arg0: i32, %arg1: i32, %arg2: i32) -> (i32, i32) {
    %c0_i32 = arith.constant 0 : i32
    %c0_i32_0 = arith.constant 0 : i32
    return %c0_i32, %arg2 : i32, i32
  }
  func.func @transform_2(%arg0: i32, %arg1: i32, %arg2: i32) -> (i32, i32, i32) {
    %c0_i32 = arith.constant 0 : i32
    %c0_i32_0 = arith.constant 0 : i32
    %c0_i32_1 = arith.constant 0 : i32
    return %arg0, %c0_i32, %c0_i32_0 : i32, i32, i32
  }
  func.func @transform_3(%arg0: i32, %arg1: i32, %arg2: i32) -> (i32, i32, i32) {
    %c0_i32 = arith.constant 0 : i32
    %c0_i32_0 = arith.constant 0 : i32
    %c0_i32_1 = arith.constant 0 : i32
    return %arg0, %c0_i32, %c0_i32_0 : i32, i32, i32
  }
}

</mosaic_0001>

<llo_original>
// kernel: tpu_custom_call.1
$region0: #{tpu_custom_call.1}
  #allocation0 [shape = 'u32[]', space=smem, size = 0x4, offset = 0x4, fixed_abs, tag = 'smem constant byte address 0x4 - core index']
  #allocation1 [shape = 'u32[144,128]{1,0:T(1,128)}', space=vmem, size = 0x12000, scoped, tag = 'internal scratch']
  #allocation2 [shape = 'f32[16,1]{1,0:T(8,128)}', space=vmem, size = 0x2000, scoped, tag = 'scratch operand']
  #allocation3 [shape = 'f32[1]{0:T(128)}', space=smem, size = 0x200, scoped, tag = 'scratch operand']
  %s0 = inlined_call_operand.vmem [shape: f32[32,2], index: 0, kind: input, shape index: {}]
  %s1 = inlined_call_operand.vmem [shape: f32[2,128], index: 1, kind: input, shape index: {}]
  %s2 = inlined_call_operand.hbm [shape: f32[2,1,128], index: 2, kind: output, shape index: {0}]
  %s3 = inlined_call_operand.hbm [shape: f32[2,1,128], index: 3, kind: output, shape index: {1}]
  %4 = xla_tuple %s2, %s3
  %s5 = sld [smem:[#allocation0]]
  $region69: #{tpu_custom_call.1} parent=0
    _
  %s7 = ssub.s32 1, %s5
  %s8 = scalar_select 0, %s7, %s5
  $region1: #{tpu_custom_call.1} parent=0
    #allocation4 [shape = 'u8[1024]{0}', space=vmem, size = 0x400, scoped, tag = 'output window, operand 0']
    #allocation5 [shape = 's32[2]{0}', space=sflag, size = 0x8, scoped, tag = 'scoped memory for tpu_custom_call.1']
    #allocation6 [shape = 'u8[1024]{0}', space=vmem, size = 0x400, scoped, tag = 'output window, operand 1']
    #allocation7 [shape = 's32[2]{0}', space=sflag, size = 0x8, scoped, tag = 'scoped memory for tpu_custom_call.1']
    %9 = vsyncpa [#allocation5], 0
    %s10 = scalar_lea.sflag [#allocation5], 1
    %11 = vsyncpa %s10, 0
    %12 = vsyncpa [#allocation7], 0
    %s13 = scalar_lea.sflag [#allocation7], 1
    %14 = vsyncpa %s13, 0
    loop: start=0, step=1, limit=4
    $region2: #{tpu_custom_call.1} parent=1 // loop_pre_header
      _
    $region3: #{tpu_custom_call.1} parent=1 // loop_header
      %s16 = sphi 0, %s20
      %p17 = scmp.ge.s32.totalorder %s16, 4
      %s23 = sphi 0, %s42
      %s24 = sphi 0, %s38
      %s25 = sphi 0, %s34
      %s26 = sphi 0, %s23
      %s27 = sphi 0, %s24
      %s28 = sphi 0, %s25
      %s29 = sphi 0, %s26
      %s30 = sphi 0, %s27
      %s31 = sphi 0, %s28
      %s47 = sphi 0, %s49
      %s50 = sphi 0, %s47
      %s51 = sphi 0, %s50
      %s67 = sphi 0, %s51
      %s73 = sphi 0, %s75
      %s76 = sphi 0, %s73
      %s77 = sphi 0, %s76
      %s93 = sphi 0, %s77
      %s99 = sphi 0, %s101
      %s102 = sphi 0, %s99
      %s103 = sphi 0, %s102
      %s119 = sphi 0, %s103
      %s125 = sphi 0, %s127
      %s128 = sphi 0, %s125
      %s129 = sphi 0, %s128
      %s145 = sphi 0, %s129
    $region4: #{tpu_custom_call.1} parent=1 // loop_header_branch
      %19 = sbr.rel (%p17) target = $region8
    $region5: #{tpu_custom_call.1} parent=1 // loop_body
      %s21 = ssub.s32 %s16, 1
      %s22 = ssub.s32 %s16, 2
      %s32 = sadd.s32 1, %s25
      %p33 = scmp.ge.s32.totalorder %s32, 1
      %s34 = scalar_select %p33, 0, %s32
      %s35 = sadd.s32 1, %s24
      %s36 = scalar_select %p33, %s35, %s24
      %p37 = scmp.ge.s32.totalorder %s36, 1
      %s38 = scalar_select %p37, 0, %s36
      %s39 = sadd.s32 1, %s23
      %s40 = scalar_select %p37, %s39, %s23
      %p41 = scmp.ge.s32.totalorder %s40, 2
      %s42 = scalar_select %p41, 0, %s40
      %s43 = sadd.s32 %s23, %s24
      %s44 = sadd.s32 %s42, %s38
      %s45 = ssub.s32 %s43, %s44
      %p46 = scmp.eq.s32.totalorder %s45, 0
      %s48 = sadd.s32 %s47, 1
      %s49 = scalar_select %p46, %s47, %s48
      %p52 = pneg %p46
      %p53 = scmp.eq.s32.totalorder %s16, 1
      %p54 = por %p52, %p53
      %p55 = scmp.ne.s32.totalorder %s47, %s50
      %p56 = scmp.eq.s32.totalorder %s16, 0
      %p57 = por %p55, %p56
      %p58 = scmp.ne.s32.totalorder %s47, %s50
      %p59 = scmp.eq.s32.totalorder %s21, 1
      %p60 = por %p58, %p59
      %p61 = scmp.ne.s32.totalorder %s50, %s51
      %p62 = scmp.eq.s32.totalorder %s21, 0
      %p63 = por %p61, %p62
      %p64 = scmp.ne.s32.totalorder %s50, %s51
      %p65 = scmp.eq.s32.totalorder %s22, 1
      %p66 = por %p64, %p65
      %p68 = scmp.ne.s32.totalorder %s51, %s67
      %p69 = scmp.eq.s32.totalorder %s22, 0
      %p70 = por %p68, %p69
      %s71 = ssub.s32 %s25, %s34
      %p72 = scmp.eq.s32.totalorder %s71, 0
      %s74 = sadd.s32 %s73, 1
      %s75 = scalar_select %p72, %s73, %s74
      %p78 = pneg %p72
      %p79 = scmp.eq.s32.totalorder %s16, 1
      %p80 = por %p78, %p79
      %p81 = scmp.ne.s32.totalorder %s73, %s76
      %p82 = scmp.eq.s32.totalorder %s16, 0
      %p83 = por %p81, %p82
      %p84 = scmp.ne.s32.totalorder %s73, %s76
      %p85 = scmp.eq.s32.totalorder %s21, 1
      %p86 = por %p84, %p85
      %p87 = scmp.ne.s32.totalorder %s76, %s77
      %p88 = scmp.eq.s32.totalorder %s21, 0
      %p89 = por %p87, %p88
      %p90 = scmp.ne.s32.totalorder %s76, %s77
      %p91 = scmp.eq.s32.totalorder %s22, 1
      %p92 = por %p90, %p91
      %p94 = scmp.ne.s32.totalorder %s77, %s93
      %p95 = scmp.eq.s32.totalorder %s22, 0
      %p96 = por %p94, %p95
      %s97 = ssub.s32 %s23, %s42
      %p98 = scmp.eq.s32.totalorder %s97, 0
      %s100 = sadd.s32 %s99, 1
      %s101 = scalar_select %p98, %s99, %s100
      %p104 = pneg %p98
      %p105 = scmp.eq.s32.totalorder %s16, 1
      %p106 = por %p104, %p105
      %p107 = scmp.ne.s32.totalorder %s99, %s102
      %p108 = scmp.eq.s32.totalorder %s16, 0
      %p109 = por %p107, %p108
      %p110 = scmp.ne.s32.totalorder %s99, %s102
      %p111 = scmp.eq.s32.totalorder %s21, 1
      %p112 = por %p110, %p111
      %p113 = scmp.ne.s32.totalorder %s102, %s103
      %p114 = scmp.eq.s32.totalorder %s21, 0
      %p115 = por %p113, %p114
      %p116 = scmp.ne.s32.totalorder %s102, %s103
      %p117 = scmp.eq.s32.totalorder %s22, 1
      %p118 = por %p116, %p117
      %p120 = scmp.ne.s32.totalorder %s103, %s119
      %p121 = scmp.eq.s32.totalorder %s22, 0
      %p122 = por %p120, %p121
      %s123 = ssub.s32 %s23, %s42
      %p124 = scmp.eq.s32.totalorder %s123, 0
      %s126 = sadd.s32 %s125, 1
      %s127 = scalar_select %p124, %s125, %s126
      %p130 = pneg %p124
      %p131 = scmp.eq.s32.totalorder %s16, 1
      %p132 = por %p130, %p131
      %p133 = scmp.ne.s32.totalorder %s125, %s128
      %p134 = scmp.eq.s32.totalorder %s16, 0
      %p135 = por %p133, %p134
      %p136 = scmp.ne.s32.totalorder %s125, %s128
      %p137 = scmp.eq.s32.totalorder %s21, 1
      %p138 = por %p136, %p137
      %p139 = scmp.ne.s32.totalorder %s128, %s129
      %p140 = scmp.eq.s32.totalorder %s21, 0
      %p141 = por %p139, %p140
      %p142 = scmp.ne.s32.totalorder %s128, %s129
      %p143 = scmp.eq.s32.totalorder %s22, 1
      %p144 = por %p142, %p143
      %p146 = scmp.ne.s32.totalorder %s129, %s145
      %p147 = scmp.eq.s32.totalorder %s22, 0
      %p148 = por %p146, %p147
      %p149 = scmp.le.s32.totalorder 1, %s16
      %p150 = scmp.lt.s32.totalorder %s16, 3
      %p151 = pnand %p149, %p150
      %p152 = pneg %p151
      // Predicated region
      $region9: #{tpu_custom_call.1} parent=5 // pred_check
        _
      $region10: #{tpu_custom_call.1} parent=5 // pred_check_branch
        %154 = sbr.rel (%p151) target = $region12
      $region11: #{tpu_custom_call.1} parent=5 // pred_region
        %s155 = ssub.s32 %s16, 1
        // Predicated region
        $region13: #{tpu_custom_call.1} parent=11 // pred_check
          %p156 = pneg %p89
        $region14: #{tpu_custom_call.1} parent=11 // pred_check_branch
          %158 = sbr.rel (%p156) target = $region16
        $region15: #{tpu_custom_call.1} parent=11 // pred_region
          %p159 = scmp.lt.s32.totalorder %s28, 0
          %s160 = scalar_select %p159, %s28, 0
          %s161 = smul.addr %s160, 2
          %s162 = scalar_lea.vmem %s1, %s161
        $region16: #{tpu_custom_call.1} parent=11 // pred_fallthru
          _
      $region12: #{tpu_custom_call.1} parent=5 // pred_fallthru
        _
      %p163 = scmp.lt.s32.totalorder %s16, 2
      // Predicated region
      $region17: #{tpu_custom_call.1} parent=5 // pred_check
        %p164 = pneg %p163
      $region18: #{tpu_custom_call.1} parent=5 // pred_check_branch
        %166 = sbr.rel (%p164) target = $region20
      $region19: #{tpu_custom_call.1} parent=5 // pred_region
        // Predicated region
        $region21: #{tpu_custom_call.1} parent=19 // pred_check
          %p167 = pneg %p57
        $region22: #{tpu_custom_call.1} parent=19 // pred_check_branch
          %169 = sbr.rel (%p167) target = $region24
        $region23: #{tpu_custom_call.1} parent=19 // pred_region
          %s170 = sadd.s32 %s23, %s24
          %s171 = smul.u32 2, %s170
          %p172 = scmp.lt.s32.totalorder %s171, 3
          %s173 = scalar_select %p172, %s171, 3
          %s174 = smul.addr %s173, 8
          %s175 = scalar_lea.vmem %s0, %s174
          %s176 = sadd.s32 %s23, %s24
          %s177 = smul.u32 2, %s176
        $region24: #{tpu_custom_call.1} parent=19 // pred_fallthru
          _
      $region20: #{tpu_custom_call.1} parent=5 // pred_fallthru
        _
      %p178 = scmp.le.s32.totalorder 1, %s16
      %p179 = scmp.lt.s32.totalorder %s16, 3
      %p180 = pnand %p178, %p179
      %p181 = pneg %p180
      // Predicated region
      $region25: #{tpu_custom_call.1} parent=5 // pred_check
        _
      $region26: #{tpu_custom_call.1} parent=5 // pred_check_branch
        %183 = sbr.rel (%p180) target = $region28
      $region27: #{tpu_custom_call.1} parent=5 // pred_region
        %s184 = ssub.s32 %s16, 1
        %s185 = sadd.s32 %s26, %s27
        %s186 = smul.u32 2, %s185
        %p187 = scmp.lt.s32.totalorder %s186, 3
        %s188 = scalar_select %p187, %s186, 3
        %s189 = smul.addr %s188, 8
        %s190 = scalar_lea.vmem %s0, %s189
        %p191 = pneg %p63
        %p192 = pneg %p60
        %p193 = scmp.lt.s32.totalorder %s28, 0
        %s194 = scalar_select %p193, %s28, 0
        %s195 = smul.addr %s194, 2
        %s196 = scalar_lea.vmem %s1, %s195
        %p197 = pneg %p89
        %p198 = pneg %p86
        %p199 = pneg %p115
        %p200 = pneg %p112
        %s201 = sand.u32 %s102, 1
        %s202 = scalar_lea.sflag [#allocation5], %s201
        %s203 = sand.u32 %s102, 1
        %s204 = scalar_lea.vmem [#allocation4], %s203
        %p205 = pneg %p141
        %p206 = pneg %p138
        %s207 = sand.u32 %s128, 1
        %s208 = scalar_lea.sflag [#allocation7], %s207
        %s209 = sand.u32 %s128, 1
        %s210 = scalar_lea.vmem [#allocation6], %s209
        %s211 = sadd.s32 %s26, %s27
        %s212 = smul.u32 2, %s211
        %p213 = scmp.lt.s32.totalorder %s212, 3
        %s214 = scalar_select %p213, %s212, 3
        %s215 = smul.addr %s214, 8
        %s216 = scalar_lea.vmem %s0, %s215
        %s217 = sadd.s32 %s26, %s27
        %s218 = smul.u32 2, %s217
        %p219 = scmp.lt.s32.totalorder %s28, 0
        %s220 = scalar_select %p219, %s28, 0
        %s221 = smul.addr %s220, 2
        %s222 = scalar_lea.vmem %s1, %s221
        %p223 = scmp.eq.s32.totalorder %s27, 0
        %p224 = scmp.eq.s32.totalorder %s28, 0
        %p225 = pnand %p223, %p224
        %p226 = pneg %p225
        // Predicated region
        $region29: #{tpu_custom_call.1} parent=27 // pred_check
          _
        $region30: #{tpu_custom_call.1} parent=27 // pred_check_branch
          %228 = sbr.rel (%p225) target = $region32
        $region31: #{tpu_custom_call.1} parent=27 // pred_region
          %s229 = scalar_lea.smem [#allocation3], 0
          %230 = sst [smem:[%s229]] 0.0
        $region32: #{tpu_custom_call.1} parent=27 // pred_fallthru
          _
        // Predicated region
        $region33: #{tpu_custom_call.1} parent=27 // pred_check
          %p231 = pneg %p224
        $region34: #{tpu_custom_call.1} parent=27 // pred_check_branch
          %233 = sbr.rel (%p231) target = $region36
        $region35: #{tpu_custom_call.1} parent=27 // pred_region
          %vm234 = vcmask 7168
          %235 = vst.msk [vmem:[#allocation2] sm:$0xff] %vm234, inf
          %236 = vst.msk [vmem:[#allocation2 + $0x8] sm:$0xff] %vm234, inf
        $region36: #{tpu_custom_call.1} parent=27 // pred_fallthru
          _
        %s237 = smul.u32 %s28, 128
        // Predicated region
        $region37: #{tpu_custom_call.1} parent=27 // pred_check
          %p238 = pneg %p223
        $region38: #{tpu_custom_call.1} parent=27 // pred_check_branch
          %240 = sbr.rel (%p238) target = $region40
        $region39: #{tpu_custom_call.1} parent=27 // pred_region
          %s241 = sshra.s32 %s237, 7
          %s242 = sand.u32 %s237, 127
          %s243 = scalar_lea.vmem %s204, %s241 [#allocation4]
          %244 = vst [vmem:[%s243] sm:$0x1] inf
        $region40: #{tpu_custom_call.1} parent=27 // pred_fallthru
          _
        %v245 = vld [vmem:[%s216] sm:$0xff]
        %v246 = vld [vmem:[%s216 + $0x8] sm:$0xff]
        %v247 = vld [vmem:[%s222] sm:$0x1]
        %v248 = vld [vmem:[%s222 + $0x1] sm:$0x1]
        %250 = vset.pattern.permute.xlu0 0
        %251 = vperm.xlu0 %250, %v245
        %v252 = vpop.permute.xlu0 %251
        %255 = vset.pattern.permute.xlu0 0
        %256 = vperm.xlu0 %255, %v246
        %v257 = vpop.permute.xlu0 %256
        %v259 = vlaneseq
        %v260 = vshrl.u32 %v259, 7
        %v261 = vsub.s32 0, %v260
        %v262 = vrot.slane %v247, %v261
        %v263 = vsub.f32 %v252, %v262
        %v264 = vsub.f32 %v257, %v262
        %265 = vset.pattern.permute.xlu0 1
        %266 = vperm.xlu0 %265, %v245
        %v267 = vpop.permute.xlu0 %266
        %269 = vset.pattern.permute.xlu0 1
        %270 = vperm.xlu0 %269, %v246
        %v271 = vpop.permute.xlu0 %270
        %v273 = vlaneseq
        %v274 = vshrl.u32 %v273, 7
        %v275 = vsub.s32 0, %v274
        %v276 = vrot.slane %v248, %v275
        %v277 = vsub.f32 %v267, %v276
        %v278 = vsub.f32 %v271, %v276
        %v279 = vmul.f32 %v263, %v263
        %v280 = vmul.f32 %v264, %v264
        %v281 = vmul.f32 %v277, %v277
        %v282 = vmul.f32 %v278, %v278
        %v283 = vadd.f32 %v279, %v281
        %v284 = vadd.f32 %v280, %v282
        %v285 = vld [vmem:[#allocation2] sm:$0xff]
        %v286 = vld [vmem:[#allocation2 + $0x8] sm:$0xff]
        %287 = vmin.xlane.f32.xlu0 %v283
        %v288 = vpop.xlane.xlu0 %287
        %289 = vmin.xlane.f32.xlu0 %v284
        %v290 = vpop.xlane.xlu0 %289
        %v291 = vmin.f32 %v285, %v288
        %v292 = vmin.f32 %v286, %v290
        %vm293 = vcmask 7168
        %294 = vst.msk [vmem:[#allocation2] sm:$0xff] %vm293, %v291
        %295 = vst.msk [vmem:[#allocation2 + $0x8] sm:$0xff] %vm293, %v292
        %s296 = sshra.s32 %s237, 7
        %s297 = sand.u32 %s237, 127
        %s298 = scalar_lea.vmem %s204, %s296 [#allocation4]
        %v299 = vld [vmem:[%s298] sm:$0x1]
        %v300 = vmin.f32 %v283, %v284
        %v301 = vrot.slane %v300, 4
        %v302 = vmin.f32 %v300, %v301
        %v303 = vrot.slane %v302, 2
        %v304 = vmin.f32 %v302, %v303
        %v305 = vrot.slane %v304, 1
        %v306 = vmin.f32 %v304, %v305
        %v307 = vmin.f32 %v299, %v306
        %308 = vst [vmem:[%s298] sm:$0x1] %v307
        // Predicated region
        $region41: #{tpu_custom_call.1} parent=27 // pred_check
          %p309 = pneg %p224
        $region42: #{tpu_custom_call.1} parent=27 // pred_check_branch
          %311 = sbr.rel (%p309) target = $region44
        $region43: #{tpu_custom_call.1} parent=27 // pred_region
          %s312 = sadd.s32 %s26, %s27
          %s313 = smul.u32 %s312, 16
          %v314 = vlaneseq
          %v315 = vshrl.u32 %v314, 7
          %v316 = vadd.s32 %v315, 8
          %v317 = vstv %s313
          %v318 = vadd.s32 %v317, %v315
          %v319 = vadd.s32 %v317, %v316
          %vm320 = vcmp.lt.s32.totalorder %v318, 18
          %vm321 = vcmp.lt.s32.totalorder %v319, 18
          %v322 = vld [vmem:[#allocation2] sm:$0xff]
          %v323 = vld [vmem:[#allocation2 + $0x8] sm:$0xff]
          %v324 = vrsqrt.pop %v322
          %v325 = vmul.f32 %v322, %v324
          %vm326 = vcmp.eq.f32.partialorder %v322, inf
          %v327 = vsel %vm326, %v322, %v325
          %vm328 = vcmp.eq.f32.partialorder %v322, 0.0
          %v329 = vand.u32 %v322, 2147483648
          %v330 = vsel %vm328, %v329, %v327
          %v331 = vrsqrt.pop %v323
          %v332 = vmul.f32 %v323, %v331
          %vm333 = vcmp.eq.f32.partialorder %v323, inf
          %v334 = vsel %vm333, %v323, %v332
          %vm335 = vcmp.eq.f32.partialorder %v323, 0.0
          %v336 = vand.u32 %v323, 2147483648
          %v337 = vsel %vm335, %v336, %v334
          %v338 = vsel %vm320, %v330, 0.0
          %v339 = vsel %vm321, %v337, 0.0
          %s340 = sld [smem:[#allocation3]]
          %v341 = vsel %vm293, %v338, 0.0
          %v342 = vsel %vm293, %v339, 0.0
          %v343 = vadd.f32 %v341, %v342
          %344 = vadd.xlane.f32.xlu0 %v343
          %v345 = vpop.xlane.xlu0 %344
          %v346 = vrot.slane %v345, 4
          %v347 = vadd.f32 %v345, %v346
          %v348 = vrot.slane %v347, 2
          %v349 = vadd.f32 %v347, %v348
          %v350 = vrot.slane %v349, 1
          %v351 = vadd.f32 %v349, %v350
          %s352 = vtos %v351
          %s353 = sadd.f32 %s340, %s352
          %s354 = scalar_lea.smem [#allocation3], 0
          %355 = sst [smem:[%s354]] %s353
        $region44: #{tpu_custom_call.1} parent=27 // pred_fallthru
          _
        // Predicated region
        $region45: #{tpu_custom_call.1} parent=27 // pred_check
          _
        $region46: #{tpu_custom_call.1} parent=27 // pred_check_branch
          %357 = sbr.rel (%p225) target = $region48
        $region47: #{tpu_custom_call.1} parent=27 // pred_region
          %s358 = sld [smem:[#allocation3]]
          %v359 = vstv %s358
          %360 = vst [vmem:[%s210] sm:$0x1] %v359
        $region48: #{tpu_custom_call.1} parent=27 // pred_fallthru
          _
        %s361 = sand.u32 %s102, 1
        %s362 = scalar_lea.sflag [#allocation5], %s361
        %s363 = sand.u32 %s102, 1
        %s364 = scalar_lea.vmem [#allocation4], %s363
        %s365 = sand.u32 %s128, 1
        %s366 = scalar_lea.sflag [#allocation7], %s365
        %s367 = sand.u32 %s128, 1
        %s368 = scalar_lea.vmem [#allocation6], %s367
        // Predicated region
        $region49: #{tpu_custom_call.1} parent=27 // pred_check
          %p369 = pneg %p112
        $region50: #{tpu_custom_call.1} parent=27 // pred_check_branch
          %371 = sbr.rel (%p369) target = $region52
        $region51: #{tpu_custom_call.1} parent=27 // pred_region
          %s373 = ssub.s32 16, 16
          %374 = vsyncadd %s362, %s373
          %s375 = smul.addr %s26, 16
          %s376 = scalar_lea.hbm %s2, %s375
          %s378 = sshll.u32 %s364, 4
          %s379 = int_to_ptr.vmem [resolvable:$true] %s378
          %381 = dma.vmem_to_hbm [thread:$0]  %s379, 16, %s376, %s362
        $region52: #{tpu_custom_call.1} parent=27 // pred_fallthru
          _
        // Predicated region
        $region53: #{tpu_custom_call.1} parent=27 // pred_check
          %p382 = pneg %p138
        $region54: #{tpu_custom_call.1} parent=27 // pred_check_branch
          %384 = sbr.rel (%p382) target = $region56
        $region55: #{tpu_custom_call.1} parent=27 // pred_region
          %s386 = ssub.s32 16, 16
          %387 = vsyncadd %s366, %s386
          %s388 = smul.addr %s26, 16
          %s389 = scalar_lea.hbm %s3, %s388
          %s391 = sshll.u32 %s368, 4
          %s392 = int_to_ptr.vmem [resolvable:$true] %s391
          %394 = dma.vmem_to_hbm [thread:$0]  %s392, 16, %s389, %s366
        $region56: #{tpu_custom_call.1} parent=27 // pred_fallthru
          _
      $region28: #{tpu_custom_call.1} parent=5 // pred_fallthru
        _
      %p395 = scmp.le.s32.totalorder 2, %s16
      // Predicated region
      $region57: #{tpu_custom_call.1} parent=5 // pred_check
        %p396 = pneg %p395
      $region58: #{tpu_custom_call.1} parent=5 // pred_check_branch
        %398 = sbr.rel (%p396) target = $region60
      $region59: #{tpu_custom_call.1} parent=5 // pred_region
        %s399 = ssub.s32 %s16, 2
        // Predicated region
        $region61: #{tpu_custom_call.1} parent=59 // pred_check
          %p400 = pneg %p118
        $region62: #{tpu_custom_call.1} parent=59 // pred_check_branch
          %402 = sbr.rel (%p400) target = $region64
        $region63: #{tpu_custom_call.1} parent=59 // pred_region
          %s403 = sand.u32 %s103, 1
          %s404 = scalar_lea.sflag [#allocation5], %s403
          %s405 = sand.u32 %s103, 1
          %s406 = scalar_lea.vmem [#allocation4], %s405
          %407 = dma.done %s404, 16
        $region64: #{tpu_custom_call.1} parent=59 // pred_fallthru
          _
        // Predicated region
        $region65: #{tpu_custom_call.1} parent=59 // pred_check
          %p408 = pneg %p144
        $region66: #{tpu_custom_call.1} parent=59 // pred_check_branch
          %410 = sbr.rel (%p408) target = $region68
        $region67: #{tpu_custom_call.1} parent=59 // pred_region
          %s411 = sand.u32 %s129, 1
          %s412 = scalar_lea.sflag [#allocation7], %s411
          %s413 = sand.u32 %s129, 1
          %s414 = scalar_lea.vmem [#allocation6], %s413
          %415 = dma.done %s412, 16
        $region68: #{tpu_custom_call.1} parent=59 // pred_fallthru
          _
      $region60: #{tpu_custom_call.1} parent=5 // pred_fallthru
        _
    $region6: #{tpu_custom_call.1} parent=1 // loop_footer
      %s20 = sadd.s32 1, %s16
    $region7: #{tpu_custom_call.1} parent=1 // loop_footer_branch
      %15 = sbr.rel target = $region3
    $region8: #{tpu_custom_call.1} parent=1 // loop_exit
      _
    %416 = vsyncpa [#allocation5], 1
    %s417 = scalar_lea.sflag [#allocation5], 1
    %418 = vsyncpa %s417, 1
    %419 = vsyncpa [#allocation7], 1
    %s420 = scalar_lea.sflag [#allocation7], 1
    %421 = vsyncpa %s420, 1

</llo_original>
